<compile_context>
chip_gen: v7x
topology: tpu7x:2x2x1
jax: 0.10.0
libtpu: 0.0.40
codegen_flags: <defaults>
</compile_context>

<pallas_src>
import functools

import jax
import jax.numpy as jnp
from jax.experimental import pallas as pl
from jax.experimental.pallas import tpu as pltpu


# ----------------------------------------------------------------------------- kernels
def _regressor_single_kernel(x_ref, w1_ref, b1_ref, w2_ref, b2_ref, o_ref, *, inv_hw):
    """1-D grid over batch tiles; tile_hw == HW so the pool is a single reduce."""
    x = x_ref[...].astype(jnp.float32)                      # (tile_n, C, HW)
    pooled = jnp.sum(x, axis=-1) * inv_hw                   # AdaptiveAvgPool2d + flatten
    h = jnp.dot(pooled, w1_ref[...].astype(jnp.float32),
                preferred_element_type=jnp.float32)
    h = jnp.maximum(h + b1_ref[...].astype(jnp.float32), 0.0)   # Linear + ReLU
    out = jnp.dot(h, w2_ref[...].astype(jnp.float32),
                  preferred_element_type=jnp.float32)
    o_ref[...] = (out + b2_ref[...].astype(jnp.float32)).astype(o_ref.dtype)


def _regressor_reduce_kernel(x_ref, w1_ref, b1_ref, w2_ref, b2_ref, o_ref, acc_ref,
                             *, inv_hw):
    """2-D grid: (batch tiles, spatial tiles); axis 1 is the spatial reduction."""
    s = pl.program_id(1)

    x = x_ref[...].astype(jnp.float32)                      # (tile_n, C, tile_hw)
    partial = jnp.sum(x, axis=-1)                           # (tile_n, C)

    # First spatial step writes directly (no zero-then-add round trip).
    @pl.when(s == 0)
    def _():
        acc_ref[...] = partial

    @pl.when(s > 0)
    def _():
        acc_ref[...] += partial

    # Finalize: pool -> fc1 -> ReLU -> fc2.
    @pl.when(s == pl.num_programs(1) - 1)
    def _():
        pooled = acc_ref[...] * inv_hw
        h = jnp.dot(pooled, w1_ref[...].astype(jnp.float32),
                    preferred_element_type=jnp.float32)
        h = jnp.maximum(h + b1_ref[...].astype(jnp.float32), 0.0)
        out = jnp.dot(h, w2_ref[...].astype(jnp.float32),
                      preferred_element_type=jnp.float32)
        o_ref[...] = (out + b2_ref[...].astype(jnp.float32)).astype(o_ref.dtype)


# ----------------------------------------------------------------------------- tiling
def _vmem_capacity_bytes():
    """Per-core VMEM capacity; conservative 64 MiB (v7x) fallback."""
    try:
        return int(pltpu.get_tpu_info().vmem_capacity_bytes)
    except Exception:
        return 64 * 1024 * 1024


def _tile_n_candidates(N):
    """Divisors of N that are multiples of 8 (layout-legal output blocks),
    preferring choices that give >= 2 batch grid steps (v7x megacore)."""
    cands = [d for d in range(8, N + 1, 8) if N % d == 0]
    two_step = [d for d in cands if N // d >= 2]
    pool = two_step if two_step else cands
    if not pool:
        pool = [N]                     # block == full batch dim is always legal
    return sorted(set(pool), reverse=True)


def _tile_hw_candidates(HW):
    """Prefer the full spatial extent (contiguous DMA), then 128-multiple divisors."""
    splits = sorted([m for m in range(128, HW, 128) if HW % m == 0], reverse=True)
    return [HW] + splits


def _select_tiles(N, C, HW, itemsize, budget_x):
    tn_cands = _tile_n_candidates(N)
    thw_cands = _tile_hw_candidates(HW)

    def stream_bytes(tn, thw):
        return 2 * tn * C * thw * itemsize          # double-buffered x stream

    for thw in thw_cands:               # contiguous full-HW first, split only if needed
        for tn in tn_cands:             # biggest batch tile that fits
            if stream_bytes(tn, thw) <= budget_x:
                return tn, thw
    # Nothing fits the budget (e.g. non-128-multiple HW with huge C): fall back to the
    # smallest legal tiles and rely on the raised vmem limit.
    return min(tn_cands), min(thw_cands)


# ----------------------------------------------------------------------------- wrapper
def regressor_forward(x_nchw, w1, b1, w2, b2, *,
                      stream_dtype=None,
                      stream_budget_bytes=None,
                      vmem_limit_bytes=None):
    """x_nchw: (N, C, H, W).  Returns (N, num_classes) float32.

    stream_dtype:        optionally cast activations (e.g. jnp.bfloat16) to halve the
                         HBM-bound x stream; accumulation stays f32 in-kernel.
    stream_budget_bytes: override the double-buffered x-stream VMEM budget (testing).
    vmem_limit_bytes:    override the Mosaic scoped-VMEM limit.
    """
    N, C, H, W = x_nchw.shape
    HW = H * W
    hidden = w1.shape[1]
    num_classes = w2.shape[1]

    # Glue reshape: NCHW -> (N, C, H*W); reduction axis last (lane dim).
    x = x_nchw.reshape(N, C, HW)
    if stream_dtype is not None and x.dtype != stream_dtype:
        x = x.astype(stream_dtype)
    b1_2d = b1.reshape(1, hidden)
    b2_2d = b2.reshape(1, num_classes)

    itemsize = jnp.dtype(x.dtype).itemsize
    weight_bytes = int((w1.size + b1.size + w2.size + b2.size) * jnp.dtype(w1.dtype).itemsize)

    # ---- generation-aware VMEM budgets --------------------------------------
    vmem_cap = _vmem_capacity_bytes()          # 128 MiB on v5e/v6e, 64 MiB per-core on v7x
    if stream_budget_bytes is None:
        budget_x = max(4 * 1024 * 1024, int(0.40 * vmem_cap) - weight_bytes)
    else:
        budget_x = int(stream_budget_bytes)
    if vmem_limit_bytes is None:
        vmem_limit_bytes = max(32 * 1024 * 1024,
                               min(int(0.85 * vmem_cap), 100 * 1024 * 1024))

    tile_n, tile_hw = _select_tiles(N, C, HW, itemsize, budget_x)
    single_step = (tile_hw == HW)

    # ---- grid / specs ---------------------------------------------------------
    if single_step:
        grid = (N // tile_n,)
        dims = ("parallel",)
        x_spec = pl.BlockSpec((tile_n, C, HW), lambda n: (n, 0, 0))
        out_spec = pl.BlockSpec((tile_n, num_classes), lambda n: (n, 0))
        widx = lambda n: (0, 0)
        scratch = []
        kernel = functools.partial(_regressor_single_kernel, inv_hw=1.0 / float(HW))
    else:
        grid = (N // tile_n, HW // tile_hw)
        dims = ("parallel", "arbitrary")
        x_spec = pl.BlockSpec((tile_n, C, tile_hw), lambda n, s: (n, 0, s))
        out_spec = pl.BlockSpec((tile_n, num_classes), lambda n, s: (n, 0))
        widx = lambda n, s: (0, 0)
        scratch = [pltpu.VMEM((tile_n, C), jnp.float32)]
        kernel = functools.partial(_regressor_reduce_kernel, inv_hw=1.0 / float(HW))

    # Advisory cost hint: bandwidth-dominated custom call.
    flops = int(N * C * HW + 2 * N * C * hidden + 2 * N * hidden * num_classes)
    bytes_accessed = int(x.size * itemsize + weight_bytes + N * num_classes * 4)

    def _run(single_buffer_weights):
        # Constant-index weights never re-DMA; single-buffer them to reclaim VMEM.
        wkw = {"pipeline_mode": pl.Buffered(1)} if single_buffer_weights else {}
        in_specs = [
            x_spec,
            pl.BlockSpec((C, hidden), widx, **wkw),
            pl.BlockSpec((1, hidden), widx, **wkw),
            pl.BlockSpec((hidden, num_classes), widx, **wkw),
            pl.BlockSpec((1, num_classes), widx, **wkw),
        ]
        out = pl.pallas_call(
            kernel,
            out_shape=jax.ShapeDtypeStruct((N, num_classes), jnp.float32),
            grid_spec=pltpu.PrefetchScalarGridSpec(
                num_scalar_prefetch=0,
                grid=grid,
                in_specs=in_specs,
                out_specs=out_spec,
                scratch_shapes=scratch,
            ),
            compiler_params=pltpu.CompilerParams(
                dimension_semantics=dims,
                vmem_limit_bytes=vmem_limit_bytes,
            ),
            cost_estimate=pl.CostEstimate(
                flops=flops, transcendentals=0, bytes_accessed=bytes_accessed
            ),
        )(x, w1, b1_2d, w2, b2_2d)
        return jax.block_until_ready(out)

    try:
        return _run(True)
    except Exception:
        # Fallback for JAX versions that reject Buffered(1) on constant inputs.
        return _run(False)


def init_params(key, num_features, num_classes):
    """Deterministic synthetic init (nn.Linear params, pre-transposed to (in, out))."""
    hidden = num_features // 4
    k1, k2, k3, k4 = jax.random.split(key, 4)
    w1 = jax.random.normal(k1, (num_features, hidden), jnp.float32) * 0.1
    b1 = jax.random.normal(k2, (hidden,), jnp.float32) * 0.1
    w2 = jax.random.normal(k3, (hidden, num_classes), jnp.float32) * 0.1
    b2 = jax.random.normal(k4, (num_classes,), jnp.float32) * 0.1
    return w1, b1, w2, b2


if __name__ == "__main__":
    # Small demo: num_features = 32 -> hidden = 8; HW = 1024.
    N, C, H, W = 2, 32, 32, 32
    num_classes = 4

    key = jax.random.PRNGKey(0)
    kx, kp = jax.random.split(key)
    x = jax.random.normal(kx, (N, C, H, W), jnp.float32)
    w1, b1, w2, b2 = init_params(kp, C, num_classes)

    # Pure-JAX reference of the same math.
    pooled = jnp.mean(x.reshape(N, C, H * W), axis=-1)
    ref = jnp.maximum(pooled @ w1 + b1, 0.0) @ w2 + b2

    # 1) Default path: full-HW contiguous tiles -> single-step kernel, f32 stream.
    out = regressor_forward(x, w1, b1, w2, b2)
    assert out.shape == (N, num_classes)
    assert jnp.allclose(out, ref, atol=1e-4, rtol=1e-4), "single-step mismatch"

    # 2) Force the multi-step spatial-reduction kernel with a tiny stream budget.
    out_multi = regressor_forward(x, w1, b1, w2, b2, stream_budget_bytes=128 * 1024)
    assert jnp.allclose(out_multi, ref, atol=1e-4, rtol=1e-4), "multi-step mismatch"

    # 3) bf16 activation streaming (f32 accumulate in-kernel), relaxed tolerance.
    out_bf16 = regressor_forward(x, w1, b1, w2, b2, stream_dtype=jnp.bfloat16)
    assert jnp.allclose(out_bf16, ref, atol=3e-2, rtol=3e-2), "bf16-stream mismatch"

    print("KERNEL_OK")
</pallas_src>

<mosaic_0001>
module attributes {stable_mosaic.version = 11 : i64} {
  func.func @_regressor_single_kernel(%arg0: i32, %arg1: memref<2x32x1024xf32, #tpu.memory_space<vmem>>, %arg2: memref<32x8xf32, #tpu.memory_space<vmem>>, %arg3: memref<1x8xf32, #tpu.memory_space<vmem>>, %arg4: memref<8x4xf32, #tpu.memory_space<vmem>>, %arg5: memref<1x4xf32, #tpu.memory_space<vmem>>, %arg6: memref<2x4xf32, #tpu.memory_space<vmem>>) attributes {dimension_semantics = [#tpu.dimension_semantics<parallel>], iteration_bounds = array<i64: 1>, scalar_prefetch = 0 : i64, scratch_operands = 0 : i64, tpu.core_type = #tpu.core_type<tc>, window_params = [{transform_indices = @transform_0, window_bounds = array<i64: 2, 32, 1024>}, {pipeline_mode = #tpu.pipeline_mode<synchronous>, transform_indices = @transform_1, window_bounds = array<i64: 32, 8>}, {pipeline_mode = #tpu.pipeline_mode<synchronous>, transform_indices = @transform_2, window_bounds = array<i64: 1, 8>}, {pipeline_mode = #tpu.pipeline_mode<synchronous>, transform_indices = @transform_3, window_bounds = array<i64: 8, 4>}, {pipeline_mode = #tpu.pipeline_mode<synchronous>, transform_indices = @transform_4, window_bounds = array<i64: 1, 4>}, {transform_indices = @transform_5, window_bounds = array<i64: 2, 4>}]} {
    %c0 = arith.constant 0 : index
    %c0_0 = arith.constant 0 : index
    %c0_1 = arith.constant 0 : index
    %0 = vector.load %arg1[%c0, %c0_0, %c0_1] : memref<2x32x1024xf32, #tpu.memory_space<vmem>>, vector<2x32x1024xf32>
    %cst = arith.constant dense<0.000000e+00> : vector<2x32xf32>
    %1 = vector.multi_reduction <add>, %0, %cst [2] : vector<2x32x1024xf32> to vector<2x32xf32>
    %cst_2 = arith.constant 9.765625E-4 : f32
    %2 = vector.broadcast %cst_2 : f32 to vector<2x32xf32>
    %3 = arith.mulf %1, %2 : vector<2x32xf32>
    %c0_3 = arith.constant 0 : index
    %c0_4 = arith.constant 0 : index
    %4 = vector.load %arg2[%c0_3, %c0_4] : memref<32x8xf32, #tpu.memory_space<vmem>>, vector<32x8xf32>
    %cst_5 = arith.constant dense<0.000000e+00> : vector<2x8xf32>
    %5 = tpu.matmul %3, %4, %cst_5 {dimension_numbers = #tpu.dot_dimension_numbers<[1], [0], [0], [1], [0, 0, 1, 1], [], []>} : vector<2x32xf32>, vector<32x8xf32>, vector<2x8xf32> -> vector<2x8xf32>
    %c0_6 = arith.constant 0 : index
    %c0_7 = arith.constant 0 : index
    %6 = vector.load %arg3[%c0_6, %c0_7] : memref<1x8xf32, #tpu.memory_space<vmem>>, vector<1x8xf32>
    %7 = vector.broadcast %6 : vector<1x8xf32> to vector<2x8xf32>
    %8 = arith.addf %5, %7 : vector<2x8xf32>
    %cst_8 = arith.constant 0.000000e+00 : f32
    %9 = vector.broadcast %cst_8 : f32 to vector<2x8xf32>
    %10 = arith.maximumf %8, %9 : vector<2x8xf32>
    %c0_9 = arith.constant 0 : index
    %c0_10 = arith.constant 0 : index
    %11 = vector.load %arg4[%c0_9, %c0_10] : memref<8x4xf32, #tpu.memory_space<vmem>>, vector<8x4xf32>
    %cst_11 = arith.constant dense<0.000000e+00> : vector<2x4xf32>
    %12 = tpu.matmul %10, %11, %cst_11 {dimension_numbers = #tpu.dot_dimension_numbers<[1], [0], [0], [1], [0, 0, 1, 1], [], []>} : vector<2x8xf32>, vector<8x4xf32>, vector<2x4xf32> -> vector<2x4xf32>
    %c0_12 = arith.constant 0 : index
    %c0_13 = arith.constant 0 : index
    %13 = vector.load %arg5[%c0_12, %c0_13] : memref<1x4xf32, #tpu.memory_space<vmem>>, vector<1x4xf32>
    %14 = vector.broadcast %13 : vector<1x4xf32> to vector<2x4xf32>
    %15 = arith.addf %12, %14 : vector<2x4xf32>
    %c0_14 = arith.constant 0 : index
    %c0_15 = arith.constant 0 : index
    %16 = vector.load %arg6[%c0_14, %c0_15] : memref<2x4xf32, #tpu.memory_space<vmem>>, vector<2x4xf32>
    tpu.vector_store %arg6[%c0_14, %c0_15], %15 {strides = array<i32>} : memref<2x4xf32, #tpu.memory_space<vmem>>, vector<2x4xf32>,
    return
  }
  func.func @transform_0(%arg0: i32) -> (i32, i32, i32) {
    %c0_i32 = arith.constant 0 : i32
    %c0_i32_0 = arith.constant 0 : i32
    %c0_i32_1 = arith.constant 0 : i32
    return %arg0, %c0_i32, %c0_i32_0 : i32, i32, i32
  }
  func.func @transform_1(%arg0: i32) -> (i32, i32) {
    %c0_i32 = arith.constant 0 : i32
    %c0_i32_0 = arith.constant 0 : i32
    %c0_i32_1 = arith.constant 0 : i32
    return %c0_i32, %c0_i32_0 : i32, i32
  }
  func.func @transform_2(%arg0: i32) -> (i32, i32) {
    %c0_i32 = arith.constant 0 : i32
    %c0_i32_0 = arith.constant 0 : i32
    %c0_i32_1 = arith.constant 0 : i32
    return %c0_i32, %c0_i32_0 : i32, i32
  }
  func.func @transform_3(%arg0: i32) -> (i32, i32) {
    %c0_i32 = arith.constant 0 : i32
    %c0_i32_0 = arith.constant 0 : i32
    %c0_i32_1 = arith.constant 0 : i32
    return %c0_i32, %c0_i32_0 : i32, i32
  }
  func.func @transform_4(%arg0: i32) -> (i32, i32) {
    %c0_i32 = arith.constant 0 : i32
    %c0_i32_0 = arith.constant 0 : i32
    %c0_i32_1 = arith.constant 0 : i32
    return %c0_i32, %c0_i32_0 : i32, i32
  }
  func.func @transform_5(%arg0: i32) -> (i32, i32) {
    %c0_i32 = arith.constant 0 : i32
    %c0_i32_0 = arith.constant 0 : i32
    return %arg0, %c0_i32 : i32, i32
  }
}

module attributes {stable_mosaic.version = 11 : i64} {
  func.func @_regressor_single_kernel(%arg0: i32, %arg1: memref<2x32x1024xf32, #tpu.memory_space<vmem>>, %arg2: memref<32x8xf32, #tpu.memory_space<vmem>>, %arg3: memref<1x8xf32, #tpu.memory_space<vmem>>, %arg4: memref<8x4xf32, #tpu.memory_space<vmem>>, %arg5: memref<1x4xf32, #tpu.memory_space<vmem>>, %arg6: memref<2x4xf32, #tpu.memory_space<vmem>>) attributes {dimension_semantics = [#tpu.dimension_semantics<parallel>], iteration_bounds = array<i64: 1>, scalar_prefetch = 0 : i64, scratch_operands = 0 : i64, tpu.core_type = #tpu.core_type<tc>, window_params = [{transform_indices = @transform_0, window_bounds = array<i64: 2, 32, 1024>}, {pipeline_mode = #tpu.pipeline_mode<synchronous>, transform_indices = @transform_1, window_bounds = array<i64: 32, 8>}, {pipeline_mode = #tpu.pipeline_mode<synchronous>, transform_indices = @transform_2, window_bounds = array<i64: 1, 8>}, {pipeline_mode = #tpu.pipeline_mode<synchronous>, transform_indices = @transform_3, window_bounds = array<i64: 8, 4>}, {pipeline_mode = #tpu.pipeline_mode<synchronous>, transform_indices = @transform_4, window_bounds = array<i64: 1, 4>}, {transform_indices = @transform_5, window_bounds = array<i64: 2, 4>}]} {
    %c0 = arith.constant 0 : index
    %c0_0 = arith.constant 0 : index
    %c0_1 = arith.constant 0 : index
    %0 = vector.load %arg1[%c0, %c0_0, %c0_1] : memref<2x32x1024xf32, #tpu.memory_space<vmem>>, vector<2x32x1024xf32>
    %cst = arith.constant dense<0.000000e+00> : vector<2x32xf32>
    %1 = vector.multi_reduction <add>, %0, %cst [2] : vector<2x32x1024xf32> to vector<2x32xf32>
    %cst_2 = arith.constant 9.765625E-4 : f32
    %2 = vector.broadcast %cst_2 : f32 to vector<2x32xf32>
    %3 = arith.mulf %1, %2 : vector<2x32xf32>
    %c0_3 = arith.constant 0 : index
    %c0_4 = arith.constant 0 : index
    %4 = vector.load %arg2[%c0_3, %c0_4] : memref<32x8xf32, #tpu.memory_space<vmem>>, vector<32x8xf32>
    %cst_5 = arith.constant dense<0.000000e+00> : vector<2x8xf32>
    %5 = tpu.matmul %3, %4, %cst_5 {dimension_numbers = #tpu.dot_dimension_numbers<[1], [0], [0], [1], [0, 0, 1, 1], [], []>} : vector<2x32xf32>, vector<32x8xf32>, vector<2x8xf32> -> vector<2x8xf32>
    %c0_6 = arith.constant 0 : index
    %c0_7 = arith.constant 0 : index
    %6 = vector.load %arg3[%c0_6, %c0_7] : memref<1x8xf32, #tpu.memory_space<vmem>>, vector<1x8xf32>
    %7 = vector.broadcast %6 : vector<1x8xf32> to vector<2x8xf32>
    %8 = arith.addf %5, %7 : vector<2x8xf32>
    %cst_8 = arith.constant 0.000000e+00 : f32
    %9 = vector.broadcast %cst_8 : f32 to vector<2x8xf32>
    %10 = arith.maximumf %8, %9 : vector<2x8xf32>
    %c0_9 = arith.constant 0 : index
    %c0_10 = arith.constant 0 : index
    %11 = vector.load %arg4[%c0_9, %c0_10] : memref<8x4xf32, #tpu.memory_space<vmem>>, vector<8x4xf32>
    %cst_11 = arith.constant dense<0.000000e+00> : vector<2x4xf32>
    %12 = tpu.matmul %10, %11, %cst_11 {dimension_numbers = #tpu.dot_dimension_numbers<[1], [0], [0], [1], [0, 0, 1, 1], [], []>} : vector<2x8xf32>, vector<8x4xf32>, vector<2x4xf32> -> vector<2x4xf32>
    %c0_12 = arith.constant 0 : index
    %c0_13 = arith.constant 0 : index
    %13 = vector.load %arg5[%c0_12, %c0_13] : memref<1x4xf32, #tpu.memory_space<vmem>>, vector<1x4xf32>
    %14 = vector.broadcast %13 : vector<1x4xf32> to vector<2x4xf32>
    %15 = arith.addf %12, %14 : vector<2x4xf32>
    %c0_14 = arith.constant 0 : index
    %c0_15 = arith.constant 0 : index
    %16 = vector.load %arg6[%c0_14, %c0_15] : memref<2x4xf32, #tpu.memory_space<vmem>>, vector<2x4xf32>
    tpu.vector_store %arg6[%c0_14, %c0_15], %15 {strides = array<i32>} : memref<2x4xf32, #tpu.memory_space<vmem>>, vector<2x4xf32>,
    return
  }
  func.func @transform_0(%arg0: i32) -> (i32, i32, i32) {
    %c0_i32 = arith.constant 0 : i32
    %c0_i32_0 = arith.constant 0 : i32
    %c0_i32_1 = arith.constant 0 : i32
    return %arg0, %c0_i32, %c0_i32_0 : i32, i32, i32
  }
  func.func @transform_1(%arg0: i32) -> (i32, i32) {
    %c0_i32 = arith.constant 0 : i32
    %c0_i32_0 = arith.constant 0 : i32
    %c0_i32_1 = arith.constant 0 : i32
    return %c0_i32, %c0_i32_0 : i32, i32
  }
  func.func @transform_2(%arg0: i32) -> (i32, i32) {
    %c0_i32 = arith.constant 0 : i32
    %c0_i32_0 = arith.constant 0 : i32
    %c0_i32_1 = arith.constant 0 : i32
    return %c0_i32, %c0_i32_0 : i32, i32
  }
  func.func @transform_3(%arg0: i32) -> (i32, i32) {
    %c0_i32 = arith.constant 0 : i32
    %c0_i32_0 = arith.constant 0 : i32
    %c0_i32_1 = arith.constant 0 : i32
    return %c0_i32, %c0_i32_0 : i32, i32
  }
  func.func @transform_4(%arg0: i32) -> (i32, i32) {
    %c0_i32 = arith.constant 0 : i32
    %c0_i32_0 = arith.constant 0 : i32
    %c0_i32_1 = arith.constant 0 : i32
    return %c0_i32, %c0_i32_0 : i32, i32
  }
  func.func @transform_5(%arg0: i32) -> (i32, i32) {
    %c0_i32 = arith.constant 0 : i32
    %c0_i32_0 = arith.constant 0 : i32
    return %arg0, %c0_i32 : i32, i32
  }
}

</mosaic_0001>

<llo_original>
// kernel: tpu_custom_call.1
$region0: #{tpu_custom_call.1}
  #allocation0 [shape = 'u32[]', space=smem, size = 0x4, offset = 0x4, fixed_abs, tag = 'smem constant byte address 0x4 - core index']
  #allocation1 [shape = 'u32[144,128]{1,0:T(1,128)}', space=vmem, size = 0x12000, scoped, tag = 'internal scratch']
  %s0 = inlined_call_operand.hbm [shape: f32[2,32,1024], index: 0, kind: input, shape index: {}]
  %s1 = inlined_call_operand.vmem [shape: f32[32,8], index: 1, kind: input, shape index: {}]
  %s2 = inlined_call_operand.vmem [shape: f32[1,8], index: 2, kind: input, shape index: {}]
  %s3 = inlined_call_operand.vmem [shape: f32[8,4], index: 3, kind: input, shape index: {}]
  %s4 = inlined_call_operand.vmem [shape: f32[1,4], index: 4, kind: input, shape index: {}]
  %s5 = inlined_call_operand.hbm [shape: f32[2,4], index: 5, kind: output, shape index: {}]
  %s6 = sld [smem:[#allocation0]]
  $region34: #{tpu_custom_call.1} parent=0
    _
  %s8 = ssub.s32 1, %s6
  %s9 = scalar_select 0, %s8, %s6
  $region1: #{tpu_custom_call.1} parent=0
    #allocation2 [shape = 'u8[262144]{0}', space=vmem, size = 0x40000, scoped, tag = 'input window, operand 0, single buffered']
    #allocation3 [shape = 's32[1]{0}', space=sflag, size = 0x4, scoped, tag = 'scoped memory for tpu_custom_call.1']
    #allocation4 [shape = 's32[1]{0}', space=sflag, size = 0x4, scoped, tag = 'scoped memory for tpu_custom_call.1']
    #allocation5 [shape = 'u8[1024]{0}', space=vmem, size = 0x400, scoped, tag = 'output window, operand 0, single buffered']
    %10 = vsyncpa [#allocation3], 0
    %11 = vsyncpa [#allocation4], 0
    // Predicated region
    $region2: #{tpu_custom_call.1} parent=1 // pred_check
      _
    $region3: #{tpu_custom_call.1} parent=1 // pred_check_branch
      %13 = sbr.rel (0) target = $region5
    $region4: #{tpu_custom_call.1} parent=1 // pred_region
      %s15 = ssub.s32 8192, 8192
      %16 = vsyncadd [#allocation3], %s15
      %s17 = sshll.u32 [#allocation2], 4
      %s18 = int_to_ptr.vmem [resolvable:$true] %s17
      %23 = dma.hbm_to_vmem [thread:$0]  %s0, 8192, %s18, [#allocation3], 1024, 1024, 64
    $region5: #{tpu_custom_call.1} parent=1 // pred_fallthru
      _
    // Predicated region
    $region6: #{tpu_custom_call.1} parent=1 // pred_check
      _
    $region7: #{tpu_custom_call.1} parent=1 // pred_check_branch
      %25 = sbr.rel (0) target = $region9
    $region8: #{tpu_custom_call.1} parent=1 // pred_region
      _
    $region9: #{tpu_custom_call.1} parent=1 // pred_fallthru
      _
    // Predicated region
    $region10: #{tpu_custom_call.1} parent=1 // pred_check
      _
    $region11: #{tpu_custom_call.1} parent=1 // pred_check_branch
      %27 = sbr.rel (0) target = $region13
    $region12: #{tpu_custom_call.1} parent=1 // pred_region
      _
    $region13: #{tpu_custom_call.1} parent=1 // pred_fallthru
      _
    // Predicated region
    $region14: #{tpu_custom_call.1} parent=1 // pred_check
      _
    $region15: #{tpu_custom_call.1} parent=1 // pred_check_branch
      %29 = sbr.rel (0) target = $region17
    $region16: #{tpu_custom_call.1} parent=1 // pred_region
      _
    $region17: #{tpu_custom_call.1} parent=1 // pred_fallthru
      _
    // Predicated region
    $region18: #{tpu_custom_call.1} parent=1 // pred_check
      _
    $region19: #{tpu_custom_call.1} parent=1 // pred_check_branch
      %31 = sbr.rel (0) target = $region21
    $region20: #{tpu_custom_call.1} parent=1 // pred_region
      _
    $region21: #{tpu_custom_call.1} parent=1 // pred_fallthru
      _
    // Predicated region
    $region22: #{tpu_custom_call.1} parent=1 // pred_check
      _
    $region23: #{tpu_custom_call.1} parent=1 // pred_check_branch
      %33 = sbr.rel (0) target = $region25
    $region24: #{tpu_custom_call.1} parent=1 // pred_region
      %34 = dma.done [#allocation3], 8192
    $region25: #{tpu_custom_call.1} parent=1 // pred_fallthru
      _
    %v35 = vld [vmem:[#allocation2] sm:$0xff]
    %v36 = vld [vmem:[#allocation2 + $0x8] sm:$0xff]
    %v37 = vld [vmem:[#allocation2 + $0x10] sm:$0xff]
    %v38 = vld [vmem:[#allocation2 + $0x18] sm:$0xff]
    %v39 = vld [vmem:[#allocation2 + $0x20] sm:$0xff]
    %v40 = vld [vmem:[#allocation2 + $0x28] sm:$0xff]
    %v41 = vld [vmem:[#allocation2 + $0x30] sm:$0xff]
    %v42 = vld [vmem:[#allocation2 + $0x38] sm:$0xff]
    %v43 = vld [vmem:[#allocation2 + $0x40] sm:$0xff]
    %v44 = vld [vmem:[#allocation2 + $0x48] sm:$0xff]
    %v45 = vld [vmem:[#allocation2 + $0x50] sm:$0xff]
    %v46 = vld [vmem:[#allocation2 + $0x58] sm:$0xff]
    %v47 = vld [vmem:[#allocation2 + $0x60] sm:$0xff]
    %v48 = vld [vmem:[#allocation2 + $0x68] sm:$0xff]
    %v49 = vld [vmem:[#allocation2 + $0x70] sm:$0xff]
    %v50 = vld [vmem:[#allocation2 + $0x78] sm:$0xff]
    %v51 = vld [vmem:[#allocation2 + $0x80] sm:$0xff]
    %v52 = vld [vmem:[#allocation2 + $0x88] sm:$0xff]
    %v53 = vld [vmem:[#allocation2 + $0x90] sm:$0xff]
    %v54 = vld [vmem:[#allocation2 + $0x98] sm:$0xff]
    %v55 = vld [vmem:[#allocation2 + $0xa0] sm:$0xff]
    %v56 = vld [vmem:[#allocation2 + $0xa8] sm:$0xff]
    %v57 = vld [vmem:[#allocation2 + $0xb0] sm:$0xff]
    %v58 = vld [vmem:[#allocation2 + $0xb8] sm:$0xff]
    %v59 = vld [vmem:[#allocation2 + $0xc0] sm:$0xff]
    %v60 = vld [vmem:[#allocation2 + $0xc8] sm:$0xff]
    %v61 = vld [vmem:[#allocation2 + $0xd0] sm:$0xff]
    %v62 = vld [vmem:[#allocation2 + $0xd8] sm:$0xff]
    %v63 = vld [vmem:[#allocation2 + $0xe0] sm:$0xff]
    %v64 = vld [vmem:[#allocation2 + $0xe8] sm:$0xff]
    %v65 = vld [vmem:[#allocation2 + $0xf0] sm:$0xff]
    %v66 = vld [vmem:[#allocation2 + $0xf8] sm:$0xff]
    %v67 = vld [vmem:[#allocation2 + $0x100] sm:$0xff]
    %v68 = vld [vmem:[#allocation2 + $0x108] sm:$0xff]
    %v69 = vld [vmem:[#allocation2 + $0x110] sm:$0xff]
    %v70 = vld [vmem:[#allocation2 + $0x118] sm:$0xff]
    %v71 = vld [vmem:[#allocation2 + $0x120] sm:$0xff]
    %v72 = vld [vmem:[#allocation2 + $0x128] sm:$0xff]
    %v73 = vld [vmem:[#allocation2 + $0x130] sm:$0xff]
    %v74 = vld [vmem:[#allocation2 + $0x138] sm:$0xff]
    %v75 = vld [vmem:[#allocation2 + $0x140] sm:$0xff]
    %v76 = vld [vmem:[#allocation2 + $0x148] sm:$0xff]
    %v77 = vld [vmem:[#allocation2 + $0x150] sm:$0xff]
    %v78 = vld [vmem:[#allocation2 + $0x158] sm:$0xff]
    %v79 = vld [vmem:[#allocation2 + $0x160] sm:$0xff]
    %v80 = vld [vmem:[#allocation2 + $0x168] sm:$0xff]
    %v81 = vld [vmem:[#allocation2 + $0x170] sm:$0xff]
    %v82 = vld [vmem:[#allocation2 + $0x178] sm:$0xff]
    %v83 = vld [vmem:[#allocation2 + $0x180] sm:$0xff]
    %v84 = vld [vmem:[#allocation2 + $0x188] sm:$0xff]
    %v85 = vld [vmem:[#allocation2 + $0x190] sm:$0xff]
    %v86 = vld [vmem:[#allocation2 + $0x198] sm:$0xff]
    %v87 = vld [vmem:[#allocation2 + $0x1a0] sm:$0xff]
    %v88 = vld [vmem:[#allocation2 + $0x1a8] sm:$0xff]
    %v89 = vld [vmem:[#allocation2 + $0x1b0] sm:$0xff]
    %v90 = vld [vmem:[#allocation2 + $0x1b8] sm:$0xff]
    %v91 = vld [vmem:[#allocation2 + $0x1c0] sm:$0xff]
    %v92 = vld [vmem:[#allocation2 + $0x1c8] sm:$0xff]
    %v93 = vld [vmem:[#allocation2 + $0x1d0] sm:$0xff]
    %v94 = vld [vmem:[#allocation2 + $0x1d8] sm:$0xff]
    %v95 = vld [vmem:[#allocation2 + $0x1e0] sm:$0xff]
    %v96 = vld [vmem:[#allocation2 + $0x1e8] sm:$0xff]
    %v97 = vld [vmem:[#allocation2 + $0x1f0] sm:$0xff]
    %v98 = vld [vmem:[#allocation2 + $0x1f8] sm:$0xff]
    %v99 = vadd.f32 %v35, %v36
    %v100 = vadd.f32 %v99, %v37
    %v101 = vadd.f32 %v100, %v38
    %v102 = vadd.f32 %v101, %v39
    %v103 = vadd.f32 %v102, %v40
    %v104 = vadd.f32 %v103, %v41
    %v105 = vadd.f32 %v104, %v42
    %106 = vadd.xlane.f32.xlu0 %v105
    %v107 = vpop.xlane.xlu0 %106
    %v108 = vadd.f32 %v43, %v44
    %v109 = vadd.f32 %v108, %v45
    %v110 = vadd.f32 %v109, %v46
    %v111 = vadd.f32 %v110, %v47
    %v112 = vadd.f32 %v111, %v48
    %v113 = vadd.f32 %v112, %v49
    %v114 = vadd.f32 %v113, %v50
    %115 = vadd.xlane.f32.xlu0 %v114
    %v116 = vpop.xlane.xlu0 %115
    %v117 = vadd.f32 %v51, %v52
    %v118 = vadd.f32 %v117, %v53
    %v119 = vadd.f32 %v118, %v54
    %v120 = vadd.f32 %v119, %v55
    %v121 = vadd.f32 %v120, %v56
    %v122 = vadd.f32 %v121, %v57
    %v123 = vadd.f32 %v122, %v58
    %124 = vadd.xlane.f32.xlu0 %v123
    %v125 = vpop.xlane.xlu0 %124
    %v126 = vadd.f32 %v59, %v60
    %v127 = vadd.f32 %v126, %v61
    %v128 = vadd.f32 %v127, %v62
    %v129 = vadd.f32 %v128, %v63
    %v130 = vadd.f32 %v129, %v64
    %v131 = vadd.f32 %v130, %v65
    %v132 = vadd.f32 %v131, %v66
    %133 = vadd.xlane.f32.xlu0 %v132
    %v134 = vpop.xlane.xlu0 %133
    %v135 = vadd.f32 %v67, %v68
    %v136 = vadd.f32 %v135, %v69
    %v137 = vadd.f32 %v136, %v70
    %v138 = vadd.f32 %v137, %v71
    %v139 = vadd.f32 %v138, %v72
    %v140 = vadd.f32 %v139, %v73
    %v141 = vadd.f32 %v140, %v74
    %142 = vadd.xlane.f32.xlu0 %v141
    %v143 = vpop.xlane.xlu0 %142
    %v144 = vadd.f32 %v75, %v76
    %v145 = vadd.f32 %v144, %v77
    %v146 = vadd.f32 %v145, %v78
    %v147 = vadd.f32 %v146, %v79
    %v148 = vadd.f32 %v147, %v80
    %v149 = vadd.f32 %v148, %v81
    %v150 = vadd.f32 %v149, %v82
    %151 = vadd.xlane.f32.xlu0 %v150
    %v152 = vpop.xlane.xlu0 %151
    %v153 = vadd.f32 %v83, %v84
    %v154 = vadd.f32 %v153, %v85
    %v155 = vadd.f32 %v154, %v86
    %v156 = vadd.f32 %v155, %v87
    %v157 = vadd.f32 %v156, %v88
    %v158 = vadd.f32 %v157, %v89
    %v159 = vadd.f32 %v158, %v90
    %160 = vadd.xlane.f32.xlu0 %v159
    %v161 = vpop.xlane.xlu0 %160
    %v162 = vadd.f32 %v91, %v92
    %v163 = vadd.f32 %v162, %v93
    %v164 = vadd.f32 %v163, %v94
    %v165 = vadd.f32 %v164, %v95
    %v166 = vadd.f32 %v165, %v96
    %v167 = vadd.f32 %v166, %v97
    %v168 = vadd.f32 %v167, %v98
    %169 = vadd.xlane.f32.xlu0 %v168
    %v170 = vpop.xlane.xlu0 %169
    %v171 = vmul.f32 %v107, 0.0009765625
    %v172 = vmul.f32 %v116, 0.0009765625
    %v173 = vmul.f32 %v125, 0.0009765625
    %v174 = vmul.f32 %v134, 0.0009765625
    %v175 = vmul.f32 %v143, 0.0009765625
    %v176 = vmul.f32 %v152, 0.0009765625
    %v177 = vmul.f32 %v161, 0.0009765625
    %v178 = vmul.f32 %v170, 0.0009765625
    %v179 = vld [vmem:[%s1] sm:$0xff]
    %v180 = vld [vmem:[%s1 + $0x8] sm:$0xff]
    %v181 = vld [vmem:[%s1 + $0x10] sm:$0xff]
    %v182 = vld [vmem:[%s1 + $0x18] sm:$0xff]
    %v183 = vld [vmem:[%s2] sm:$0x1]
    %v185 = vlaneseq
    %v186 = vshrl.u32 %v185, 7
    %v187 = vsub.s32 0, %v186
    %v188 = vrot.slane %v183, %v187
    %v198 = vlaneseq
    %v199 = vand.u32 %v198, 127
    %v200 = vlaneseq
    %v201 = vshrl.u32 %v200, 7
    %v202 = vsub.s32 %v199, %v201
    %v203 = vrot.slane %v171, %v202
    %v204 = vadd.s32 %v199, 4294967288
    %v205 = vlaneseq
    %v206 = vshrl.u32 %v205, 7
    %v207 = vsub.s32 %v204, %v206
    %v208 = vrot.slane %v172, %v207
    %vm209 = vcmask 130112
    %v210 = vsel %vm209, %v208, %v203
    %v211 = vadd.s32 %v199, 4294967280
    %v212 = vlaneseq
    %v213 = vshrl.u32 %v212, 7
    %v214 = vsub.s32 %v211, %v213
    %v215 = vrot.slane %v173, %v214
    %vm216 = vcmask 195712
    %v217 = vsel %vm216, %v215, %v210
    %v218 = vadd.s32 %v199, 4294967272
    %v219 = vlaneseq
    %v220 = vshrl.u32 %v219, 7
    %v221 = vsub.s32 %v218, %v220
    %v222 = vrot.slane %v174, %v221
    %vm223 = vcmask 261312
    %v224 = vsel %vm223, %v222, %v217
    %v225 = vlaneseq
    %v226 = vshrl.u32 %v225, 7
    %v227 = vsub.s32 %v199, %v226
    %v228 = vrot.slane %v175, %v227
    %v229 = vlaneseq
    %v230 = vshrl.u32 %v229, 7
    %v231 = vsub.s32 %v204, %v230
    %v232 = vrot.slane %v176, %v231
    %v233 = vsel %vm209, %v232, %v228
    %v234 = vlaneseq
    %v235 = vshrl.u32 %v234, 7
    %v236 = vsub.s32 %v211, %v235
    %v237 = vrot.slane %v177, %v236
    %v238 = vsel %vm216, %v237, %v233
    %v239 = vlaneseq
    %v240 = vshrl.u32 %v239, 7
    %v241 = vsub.s32 %v218, %v240
    %v242 = vrot.slane %v178, %v241
    %v243 = vsel %vm223, %v242, %v238
    %vm244 = vcmask 1041409
    %v245 = vsel %vm244, %v243, %v224
    %vm246 = vcmask 261120
    %v247 = vsel %vm246, %v245, 0
    %249 = vmatprep.subr.mxu0 0.0
    %250 = vmatpush1.msra.mxu0 %v179
    %251 = vmatprep.subr.mxu0 0.0
    %252 = vmatpush1.msra.mxu0 %v180
    %253 = vmatprep.subr.mxu0 0.0
    %254 = vmatpush1.msra.mxu0 %v181
    %255 = vmatprep.subr.mxu0 0.0
    %256 = vmatpush1.msra.mxu0 %v182
    %257 = vmatprep.subr.mxu0 0.0
    %258 = vmatpush1.msra.mxu0 0.0
    %259 = vmatprep.subr.mxu0 0.0
    %260 = vmatpush1.msra.mxu0 0.0
    %261 = vmatprep.subr.mxu0 0.0
    %262 = vmatpush1.msra.mxu0 0.0
    %263 = vmatprep.subr.mxu0 0.0
    %264 = vmatpush1.msra.mxu0 0.0
    %265 = vmatprep.subr.mxu0 0.0
    %266 = vmatpush1.msra.mxu0 0.0
    %267 = vmatprep.subr.mxu0 0.0
    %268 = vmatpush1.msra.mxu0 0.0
    %269 = vmatprep.subr.mxu0 0.0
    %270 = vmatpush1.msra.mxu0 0.0
    %271 = vmatprep.subr.mxu0 0.0
    %272 = vmatpush1.msra.mxu0 0.0
    %273 = vmatprep.subr.mxu0 0.0
    %274 = vmatpush1.msra.mxu0 0.0
    %275 = vmatprep.subr.mxu0 0.0
    %276 = vmatpush1.msra.mxu0 0.0
    %277 = vmatprep.subr.mxu0 0.0
    %278 = vmatpush1.msra.mxu0 0.0
    %279 = vmatprep.subr.mxu0 0.0
    %280 = vmatpush1.msra.mxu0 0.0
    %281 = vmatprep.subr.mxu0 0.0
    %282 = vmatpush1.msra.mxu0 0.0
    %283 = vmatprep.subr.mxu0 0.0
    %284 = vmatpush1.msra.mxu0 0.0
    %285 = vmatprep.subr.mxu0 0.0
    %286 = vmatpush1.msra.mxu0 0.0
    %287 = vmatprep.subr.mxu0 0.0
    %288 = vmatpush1.msra.mxu0 0.0
    %289 = vmatprep.subr.mxu0 0.0
    %290 = vmatpush1.msra.mxu0 0.0
    %291 = vmatprep.subr.mxu0 0.0
    %292 = vmatpush1.msra.mxu0 0.0
    %293 = vmatprep.subr.mxu0 0.0
    %294 = vmatpush1.msra.mxu0 0.0
    %295 = vmatprep.subr.mxu0 0.0
    %296 = vmatpush1.msra.mxu0 0.0
    %297 = vmatprep.subr.mxu0 0.0
    %298 = vmatpush1.msra.mxu0 0.0
    %299 = vmatprep.subr.mxu0 0.0
    %300 = vmatpush1.msra.mxu0 0.0
    %301 = vmatprep.subr.mxu0 0.0
    %302 = vmatpush1.msra.mxu0 0.0
    %303 = vmatprep.subr.mxu0 0.0
    %304 = vmatpush1.msra.mxu0 0.0
    %305 = vmatprep.subr.mxu0 0.0
    %306 = vmatpush1.msra.mxu0 0.0
    %307 = vmatprep.subr.mxu0 0.0
    %308 = vmatpush1.msra.mxu0 0.0
    %309 = vmatprep.subr.mxu0 0.0
    %310 = vmatpush1.msra.mxu0 0.0
    %311 = vmatprep.subr.mxu0 0.0
    %312 = vmatpush1.msra.mxu0 0.0
    %313 = vmatprep.mubr.f32.mxu0 0.0
    %314 = vmatmul.mubr.f32.gmra.mrb[0].mxu0 %v247
    %v315 = vpop.f32.mrb[0].mxu0
    %v316 = vadd.f32 %v188, %v315
    %v317 = vpop.f32.mrb[0].mxu0
    %318 = vdwg.mxu0
    %v319 = vmax.f32 %v316, 0.0
    %v320 = vld [vmem:[%s3] sm:$0xff]
    %v321 = vld [vmem:[%s4] sm:$0x1]
    %v323 = vlaneseq
    %v324 = vshrl.u32 %v323, 7
    %v325 = vsub.s32 0, %v324
    %v326 = vrot.slane %v321, %v325
    %vm328 = vcmask 64512
    %v330 = vsel %vm328, %v319, 0
    %332 = vmatprep.subr.mxu0 0.0
    %333 = vmatpush1.msra.mxu0 %v320
    %334 = vmatprep.subr.mxu0 0.0
    %335 = vmatpush1.msra.mxu0 0.0
    %336 = vmatprep.subr.mxu0 0.0
    %337 = vmatpush1.msra.mxu0 0.0
    %338 = vmatprep.subr.mxu0 0.0
    %339 = vmatpush1.msra.mxu0 0.0
    %340 = vmatprep.subr.mxu0 0.0
    %341 = vmatpush1.msra.mxu0 0.0
    %342 = vmatprep.subr.mxu0 0.0
    %343 = vmatpush1.msra.mxu0 0.0
    %344 = vmatprep.subr.mxu0 0.0
    %345 = vmatpush1.msra.mxu0 0.0
    %346 = vmatprep.subr.mxu0 0.0
    %347 = vmatpush1.msra.mxu0 0.0
    %348 = vmatprep.subr.mxu0 0.0
    %349 = vmatpush1.msra.mxu0 0.0
    %350 = vmatprep.subr.mxu0 0.0
    %351 = vmatpush1.msra.mxu0 0.0
    %352 = vmatprep.subr.mxu0 0.0
    %353 = vmatpush1.msra.mxu0 0.0
    %354 = vmatprep.subr.mxu0 0.0
    %355 = vmatpush1.msra.mxu0 0.0
    %356 = vmatprep.subr.mxu0 0.0
    %357 = vmatpush1.msra.mxu0 0.0
    %358 = vmatprep.subr.mxu0 0.0
    %359 = vmatpush1.msra.mxu0 0.0
    %360 = vmatprep.subr.mxu0 0.0
    %361 = vmatpush1.msra.mxu0 0.0
    %362 = vmatprep.subr.mxu0 0.0
    %363 = vmatpush1.msra.mxu0 0.0
    %364 = vmatprep.subr.mxu0 0.0
    %365 = vmatpush1.msra.mxu0 0.0
    %366 = vmatprep.subr.mxu0 0.0
    %367 = vmatpush1.msra.mxu0 0.0
    %368 = vmatprep.subr.mxu0 0.0
    %369 = vmatpush1.msra.mxu0 0.0
    %370 = vmatprep.subr.mxu0 0.0
    %371 = vmatpush1.msra.mxu0 0.0
    %372 = vmatprep.subr.mxu0 0.0
    %373 = vmatpush1.msra.mxu0 0.0
    %374 = vmatprep.subr.mxu0 0.0
    %375 = vmatpush1.msra.mxu0 0.0
    %376 = vmatprep.subr.mxu0 0.0
    %377 = vmatpush1.msra.mxu0 0.0
    %378 = vmatprep.subr.mxu0 0.0
    %379 = vmatpush1.msra.mxu0 0.0
    %380 = vmatprep.subr.mxu0 0.0
    %381 = vmatpush1.msra.mxu0 0.0
    %382 = vmatprep.subr.mxu0 0.0
    %383 = vmatpush1.msra.mxu0 0.0
    %384 = vmatprep.subr.mxu0 0.0
    %385 = vmatpush1.msra.mxu0 0.0
    %386 = vmatprep.subr.mxu0 0.0
    %387 = vmatpush1.msra.mxu0 0.0
    %388 = vmatprep.subr.mxu0 0.0
    %389 = vmatpush1.msra.mxu0 0.0
    %390 = vmatprep.subr.mxu0 0.0
    %391 = vmatpush1.msra.mxu0 0.0
    %392 = vmatprep.subr.mxu0 0.0
    %393 = vmatpush1.msra.mxu0 0.0
    %394 = vmatprep.subr.mxu0 0.0
    %395 = vmatpush1.msra.mxu0 0.0
    %396 = vmatprep.mubr.f32.mxu0 0.0
    %397 = vmatmul.mubr.f32.gmra.mrb[0].mxu0 %v330
    %v398 = vpop.f32.mrb[0].mxu0
    %v399 = vadd.f32 %v326, %v398
    %v400 = vpop.f32.mrb[0].mxu0
    %401 = vdwg.mxu0
    %vm402 = vcmask 25600
    %403 = vst.msk [vmem:[#allocation5] sm:$0x3] %vm402, %v399
    // Predicated region
    $region26: #{tpu_custom_call.1} parent=1 // pred_check
      _
    $region27: #{tpu_custom_call.1} parent=1 // pred_check_branch
      %405 = sbr.rel (0) target = $region29
    $region28: #{tpu_custom_call.1} parent=1 // pred_region
      %s407 = ssub.s32 32, 32
      %408 = vsyncadd [#allocation4], %s407
      %s410 = sshll.u32 [#allocation5], 4
      %s411 = int_to_ptr.vmem [resolvable:$true] %s410
      %413 = dma.vmem_to_hbm [thread:$0]  %s411, 32, %s5, [#allocation4]
    $region29: #{tpu_custom_call.1} parent=1 // pred_fallthru
      _
    // Predicated region
    $region30: #{tpu_custom_call.1} parent=1 // pred_check
      _
    $region31: #{tpu_custom_call.1} parent=1 // pred_check_branch
      %415 = sbr.rel (0) target = $region33
    $region32: #{tpu_custom_call.1} parent=1 // pred_region
      %416 = dma.done [#allocation4], 32
    $region33: #{tpu_custom_call.1} parent=1 // pred_fallthru
      _
    %417 = vsyncpa [#allocation3], 1
    %418 = vsyncpa [#allocation4], 1

// kernel: tpu_custom_call.1
$region0: #{tpu_custom_call.1}
  #allocation0 [shape = 'u32[]', space=smem, size = 0x4, offset = 0x4, fixed_abs, tag = 'smem constant byte address 0x4 - core index']
  #allocation1 [shape = 'u32[144,128]{1,0:T(1,128)}', space=vmem, size = 0x12000, scoped, tag = 'internal scratch']
  %s0 = inlined_call_operand.hbm [shape: f32[2,32,1024], index: 0, kind: input, shape index: {}]
  %s1 = inlined_call_operand.vmem [shape: f32[32,8], index: 1, kind: input, shape index: {}]
  %s2 = inlined_call_operand.vmem [shape: f32[1,8], index: 2, kind: input, shape index: {}]
  %s3 = inlined_call_operand.vmem [shape: f32[8,4], index: 3, kind: input, shape index: {}]
  %s4 = inlined_call_operand.vmem [shape: f32[1,4], index: 4, kind: input, shape index: {}]
  %s5 = inlined_call_operand.hbm [shape: f32[2,4], index: 5, kind: output, shape index: {}]
  %s6 = sld [smem:[#allocation0]]
  $region34: #{tpu_custom_call.1} parent=0
    _
  %s8 = ssub.s32 1, %s6
  %s9 = scalar_select 0, %s8, %s6
  $region1: #{tpu_custom_call.1} parent=0
    #allocation2 [shape = 'u8[262144]{0}', space=vmem, size = 0x40000, scoped, tag = 'input window, operand 0, single buffered']
    #allocation3 [shape = 's32[1]{0}', space=sflag, size = 0x4, scoped, tag = 'scoped memory for tpu_custom_call.1']
    #allocation4 [shape = 's32[1]{0}', space=sflag, size = 0x4, scoped, tag = 'scoped memory for tpu_custom_call.1']
    #allocation5 [shape = 'u8[1024]{0}', space=vmem, size = 0x400, scoped, tag = 'output window, operand 0, single buffered']
    %10 = vsyncpa [#allocation3], 0
    %11 = vsyncpa [#allocation4], 0
    // Predicated region
    $region2: #{tpu_custom_call.1} parent=1 // pred_check
      _
    $region3: #{tpu_custom_call.1} parent=1 // pred_check_branch
      %13 = sbr.rel (0) target = $region5
    $region4: #{tpu_custom_call.1} parent=1 // pred_region
      %s15 = ssub.s32 8192, 8192
      %16 = vsyncadd [#allocation3], %s15
      %s17 = sshll.u32 [#allocation2], 4
      %s18 = int_to_ptr.vmem [resolvable:$true] %s17
      %23 = dma.hbm_to_vmem [thread:$0]  %s0, 8192, %s18, [#allocation3], 1024, 1024, 64
    $region5: #{tpu_custom_call.1} parent=1 // pred_fallthru
      _
    // Predicated region
    $region6: #{tpu_custom_call.1} parent=1 // pred_check
      _
    $region7: #{tpu_custom_call.1} parent=1 // pred_check_branch
      %25 = sbr.rel (0) target = $region9
    $region8: #{tpu_custom_call.1} parent=1 // pred_region
      _
    $region9: #{tpu_custom_call.1} parent=1 // pred_fallthru
      _
    // Predicated region
    $region10: #{tpu_custom_call.1} parent=1 // pred_check
      _
    $region11: #{tpu_custom_call.1} parent=1 // pred_check_branch
      %27 = sbr.rel (0) target = $region13
    $region12: #{tpu_custom_call.1} parent=1 // pred_region
      _
    $region13: #{tpu_custom_call.1} parent=1 // pred_fallthru
      _
    // Predicated region
    $region14: #{tpu_custom_call.1} parent=1 // pred_check
      _
    $region15: #{tpu_custom_call.1} parent=1 // pred_check_branch
      %29 = sbr.rel (0) target = $region17
    $region16: #{tpu_custom_call.1} parent=1 // pred_region
      _
    $region17: #{tpu_custom_call.1} parent=1 // pred_fallthru
      _
    // Predicated region
    $region18: #{tpu_custom_call.1} parent=1 // pred_check
      _
    $region19: #{tpu_custom_call.1} parent=1 // pred_check_branch
      %31 = sbr.rel (0) target = $region21
    $region20: #{tpu_custom_call.1} parent=1 // pred_region
      _
    $region21: #{tpu_custom_call.1} parent=1 // pred_fallthru
      _
    // Predicated region
    $region22: #{tpu_custom_call.1} parent=1 // pred_check
      _
    $region23: #{tpu_custom_call.1} parent=1 // pred_check_branch
      %33 = sbr.rel (0) target = $region25
    $region24: #{tpu_custom_call.1} parent=1 // pred_region
      %34 = dma.done [#allocation3], 8192
    $region25: #{tpu_custom_call.1} parent=1 // pred_fallthru
      _
    %v35 = vld [vmem:[#allocation2] sm:$0xff]
    %v36 = vld [vmem:[#allocation2 + $0x8] sm:$0xff]
    %v37 = vld [vmem:[#allocation2 + $0x10] sm:$0xff]
    %v38 = vld [vmem:[#allocation2 + $0x18] sm:$0xff]
    %v39 = vld [vmem:[#allocation2 + $0x20] sm:$0xff]
    %v40 = vld [vmem:[#allocation2 + $0x28] sm:$0xff]
    %v41 = vld [vmem:[#allocation2 + $0x30] sm:$0xff]
    %v42 = vld [vmem:[#allocation2 + $0x38] sm:$0xff]
    %v43 = vld [vmem:[#allocation2 + $0x40] sm:$0xff]
    %v44 = vld [vmem:[#allocation2 + $0x48] sm:$0xff]
    %v45 = vld [vmem:[#allocation2 + $0x50] sm:$0xff]
    %v46 = vld [vmem:[#allocation2 + $0x58] sm:$0xff]
    %v47 = vld [vmem:[#allocation2 + $0x60] sm:$0xff]
    %v48 = vld [vmem:[#allocation2 + $0x68] sm:$0xff]
    %v49 = vld [vmem:[#allocation2 + $0x70] sm:$0xff]
    %v50 = vld [vmem:[#allocation2 + $0x78] sm:$0xff]
    %v51 = vld [vmem:[#allocation2 + $0x80] sm:$0xff]
    %v52 = vld [vmem:[#allocation2 + $0x88] sm:$0xff]
    %v53 = vld [vmem:[#allocation2 + $0x90] sm:$0xff]
    %v54 = vld [vmem:[#allocation2 + $0x98] sm:$0xff]
    %v55 = vld [vmem:[#allocation2 + $0xa0] sm:$0xff]
    %v56 = vld [vmem:[#allocation2 + $0xa8] sm:$0xff]
    %v57 = vld [vmem:[#allocation2 + $0xb0] sm:$0xff]
    %v58 = vld [vmem:[#allocation2 + $0xb8] sm:$0xff]
    %v59 = vld [vmem:[#allocation2 + $0xc0] sm:$0xff]
    %v60 = vld [vmem:[#allocation2 + $0xc8] sm:$0xff]
    %v61 = vld [vmem:[#allocation2 + $0xd0] sm:$0xff]
    %v62 = vld [vmem:[#allocation2 + $0xd8] sm:$0xff]
    %v63 = vld [vmem:[#allocation2 + $0xe0] sm:$0xff]
    %v64 = vld [vmem:[#allocation2 + $0xe8] sm:$0xff]
    %v65 = vld [vmem:[#allocation2 + $0xf0] sm:$0xff]
    %v66 = vld [vmem:[#allocation2 + $0xf8] sm:$0xff]
    %v67 = vld [vmem:[#allocation2 + $0x100] sm:$0xff]
    %v68 = vld [vmem:[#allocation2 + $0x108] sm:$0xff]
    %v69 = vld [vmem:[#allocation2 + $0x110] sm:$0xff]
    %v70 = vld [vmem:[#allocation2 + $0x118] sm:$0xff]
    %v71 = vld [vmem:[#allocation2 + $0x120] sm:$0xff]
    %v72 = vld [vmem:[#allocation2 + $0x128] sm:$0xff]
    %v73 = vld [vmem:[#allocation2 + $0x130] sm:$0xff]
    %v74 = vld [vmem:[#allocation2 + $0x138] sm:$0xff]
    %v75 = vld [vmem:[#allocation2 + $0x140] sm:$0xff]
    %v76 = vld [vmem:[#allocation2 + $0x148] sm:$0xff]
    %v77 = vld [vmem:[#allocation2 + $0x150] sm:$0xff]
    %v78 = vld [vmem:[#allocation2 + $0x158] sm:$0xff]
    %v79 = vld [vmem:[#allocation2 + $0x160] sm:$0xff]
    %v80 = vld [vmem:[#allocation2 + $0x168] sm:$0xff]
    %v81 = vld [vmem:[#allocation2 + $0x170] sm:$0xff]
    %v82 = vld [vmem:[#allocation2 + $0x178] sm:$0xff]
    %v83 = vld [vmem:[#allocation2 + $0x180] sm:$0xff]
    %v84 = vld [vmem:[#allocation2 + $0x188] sm:$0xff]
    %v85 = vld [vmem:[#allocation2 + $0x190] sm:$0xff]
    %v86 = vld [vmem:[#allocation2 + $0x198] sm:$0xff]
    %v87 = vld [vmem:[#allocation2 + $0x1a0] sm:$0xff]
    %v88 = vld [vmem:[#allocation2 + $0x1a8] sm:$0xff]
    %v89 = vld [vmem:[#allocation2 + $0x1b0] sm:$0xff]
    %v90 = vld [vmem:[#allocation2 + $0x1b8] sm:$0xff]
    %v91 = vld [vmem:[#allocation2 + $0x1c0] sm:$0xff]
    %v92 = vld [vmem:[#allocation2 + $0x1c8] sm:$0xff]
    %v93 = vld [vmem:[#allocation2 + $0x1d0] sm:$0xff]
    %v94 = vld [vmem:[#allocation2 + $0x1d8] sm:$0xff]
    %v95 = vld [vmem:[#allocation2 + $0x1e0] sm:$0xff]
    %v96 = vld [vmem:[#allocation2 + $0x1e8] sm:$0xff]
    %v97 = vld [vmem:[#allocation2 + $0x1f0] sm:$0xff]
    %v98 = vld [vmem:[#allocation2 + $0x1f8] sm:$0xff]
    %v99 = vadd.f32 %v35, %v36
    %v100 = vadd.f32 %v99, %v37
    %v101 = vadd.f32 %v100, %v38
    %v102 = vadd.f32 %v101, %v39
    %v103 = vadd.f32 %v102, %v40
    %v104 = vadd.f32 %v103, %v41
    %v105 = vadd.f32 %v104, %v42
    %106 = vadd.xlane.f32.xlu0 %v105
    %v107 = vpop.xlane.xlu0 %106
    %v108 = vadd.f32 %v43, %v44
    %v109 = vadd.f32 %v108, %v45
    %v110 = vadd.f32 %v109, %v46
    %v111 = vadd.f32 %v110, %v47
    %v112 = vadd.f32 %v111, %v48
    %v113 = vadd.f32 %v112, %v49
    %v114 = vadd.f32 %v113, %v50
    %115 = vadd.xlane.f32.xlu0 %v114
    %v116 = vpop.xlane.xlu0 %115
    %v117 = vadd.f32 %v51, %v52
    %v118 = vadd.f32 %v117, %v53
    %v119 = vadd.f32 %v118, %v54
    %v120 = vadd.f32 %v119, %v55
    %v121 = vadd.f32 %v120, %v56
    %v122 = vadd.f32 %v121, %v57
    %v123 = vadd.f32 %v122, %v58
    %124 = vadd.xlane.f32.xlu0 %v123
    %v125 = vpop.xlane.xlu0 %124
    %v126 = vadd.f32 %v59, %v60
    %v127 = vadd.f32 %v126, %v61
    %v128 = vadd.f32 %v127, %v62
    %v129 = vadd.f32 %v128, %v63
    %v130 = vadd.f32 %v129, %v64
    %v131 = vadd.f32 %v130, %v65
    %v132 = vadd.f32 %v131, %v66
    %133 = vadd.xlane.f32.xlu0 %v132
    %v134 = vpop.xlane.xlu0 %133
    %v135 = vadd.f32 %v67, %v68
    %v136 = vadd.f32 %v135, %v69
    %v137 = vadd.f32 %v136, %v70
    %v138 = vadd.f32 %v137, %v71
    %v139 = vadd.f32 %v138, %v72
    %v140 = vadd.f32 %v139, %v73
    %v141 = vadd.f32 %v140, %v74
    %142 = vadd.xlane.f32.xlu0 %v141
    %v143 = vpop.xlane.xlu0 %142
    %v144 = vadd.f32 %v75, %v76
    %v145 = vadd.f32 %v144, %v77
    %v146 = vadd.f32 %v145, %v78
    %v147 = vadd.f32 %v146, %v79
    %v148 = vadd.f32 %v147, %v80
    %v149 = vadd.f32 %v148, %v81
    %v150 = vadd.f32 %v149, %v82
    %151 = vadd.xlane.f32.xlu0 %v150
    %v152 = vpop.xlane.xlu0 %151
    %v153 = vadd.f32 %v83, %v84
    %v154 = vadd.f32 %v153, %v85
    %v155 = vadd.f32 %v154, %v86
    %v156 = vadd.f32 %v155, %v87
    %v157 = vadd.f32 %v156, %v88
    %v158 = vadd.f32 %v157, %v89
    %v159 = vadd.f32 %v158, %v90
    %160 = vadd.xlane.f32.xlu0 %v159
    %v161 = vpop.xlane.xlu0 %160
    %v162 = vadd.f32 %v91, %v92
    %v163 = vadd.f32 %v162, %v93
    %v164 = vadd.f32 %v163, %v94
    %v165 = vadd.f32 %v164, %v95
    %v166 = vadd.f32 %v165, %v96
    %v167 = vadd.f32 %v166, %v97
    %v168 = vadd.f32 %v167, %v98
    %169 = vadd.xlane.f32.xlu0 %v168
    %v170 = vpop.xlane.xlu0 %169
    %v171 = vmul.f32 %v107, 0.0009765625
    %v172 = vmul.f32 %v116, 0.0009765625
    %v173 = vmul.f32 %v125, 0.0009765625
    %v174 = vmul.f32 %v134, 0.0009765625
    %v175 = vmul.f32 %v143, 0.0009765625
    %v176 = vmul.f32 %v152, 0.0009765625
    %v177 = vmul.f32 %v161, 0.0009765625
    %v178 = vmul.f32 %v170, 0.0009765625
    %v179 = vld [vmem:[%s1] sm:$0xff]
    %v180 = vld [vmem:[%s1 + $0x8] sm:$0xff]
    %v181 = vld [vmem:[%s1 + $0x10] sm:$0xff]
    %v182 = vld [vmem:[%s1 + $0x18] sm:$0xff]
    %v183 = vld [vmem:[%s2] sm:$0x1]
    %v185 = vlaneseq
    %v186 = vshrl.u32 %v185, 7
    %v187 = vsub.s32 0, %v186
    %v188 = vrot.slane %v183, %v187
    %v198 = vlaneseq
    %v199 = vand.u32 %v198, 127
    %v200 = vlaneseq
    %v201 = vshrl.u32 %v200, 7
    %v202 = vsub.s32 %v199, %v201
    %v203 = vrot.slane %v171, %v202
    %v204 = vadd.s32 %v199, 4294967288
    %v205 = vlaneseq
    %v206 = vshrl.u32 %v205, 7
    %v207 = vsub.s32 %v204, %v206
    %v208 = vrot.slane %v172, %v207
    %vm209 = vcmask 130112
    %v210 = vsel %vm209, %v208, %v203
    %v211 = vadd.s32 %v199, 4294967280
    %v212 = vlaneseq
    %v213 = vshrl.u32 %v212, 7
    %v214 = vsub.s32 %v211, %v213
    %v215 = vrot.slane %v173, %v214
    %vm216 = vcmask 195712
    %v217 = vsel %vm216, %v215, %v210
    %v218 = vadd.s32 %v199, 4294967272
    %v219 = vlaneseq
    %v220 = vshrl.u32 %v219, 7
    %v221 = vsub.s32 %v218, %v220
    %v222 = vrot.slane %v174, %v221
    %vm223 = vcmask 261312
    %v224 = vsel %vm223, %v222, %v217
    %v225 = vlaneseq
    %v226 = vshrl.u32 %v225, 7
    %v227 = vsub.s32 %v199, %v226
    %v228 = vrot.slane %v175, %v227
    %v229 = vlaneseq
    %v230 = vshrl.u32 %v229, 7
    %v231 = vsub.s32 %v204, %v230
    %v232 = vrot.slane %v176, %v231
    %v233 = vsel %vm209, %v232, %v228
    %v234 = vlaneseq
    %v235 = vshrl.u32 %v234, 7
    %v236 = vsub.s32 %v211, %v235
    %v237 = vrot.slane %v177, %v236
    %v238 = vsel %vm216, %v237, %v233
    %v239 = vlaneseq
    %v240 = vshrl.u32 %v239, 7
    %v241 = vsub.s32 %v218, %v240
    %v242 = vrot.slane %v178, %v241
    %v243 = vsel %vm223, %v242, %v238
    %vm244 = vcmask 1041409
    %v245 = vsel %vm244, %v243, %v224
    %vm246 = vcmask 261120
    %v247 = vsel %vm246, %v245, 0
    %249 = vmatprep.subr.mxu0 0.0
    %250 = vmatpush1.msra.mxu0 %v179
    %251 = vmatprep.subr.mxu0 0.0
    %252 = vmatpush1.msra.mxu0 %v180
    %253 = vmatprep.subr.mxu0 0.0
    %254 = vmatpush1.msra.mxu0 %v181
    %255 = vmatprep.subr.mxu0 0.0
    %256 = vmatpush1.msra.mxu0 %v182
    %257 = vmatprep.subr.mxu0 0.0
    %258 = vmatpush1.msra.mxu0 0.0
    %259 = vmatprep.subr.mxu0 0.0
    %260 = vmatpush1.msra.mxu0 0.0
    %261 = vmatprep.subr.mxu0 0.0
    %262 = vmatpush1.msra.mxu0 0.0
    %263 = vmatprep.subr.mxu0 0.0
    %264 = vmatpush1.msra.mxu0 0.0
    %265 = vmatprep.subr.mxu0 0.0
    %266 = vmatpush1.msra.mxu0 0.0
    %267 = vmatprep.subr.mxu0 0.0
    %268 = vmatpush1.msra.mxu0 0.0
    %269 = vmatprep.subr.mxu0 0.0
    %270 = vmatpush1.msra.mxu0 0.0
    %271 = vmatprep.subr.mxu0 0.0
    %272 = vmatpush1.msra.mxu0 0.0
    %273 = vmatprep.subr.mxu0 0.0
    %274 = vmatpush1.msra.mxu0 0.0
    %275 = vmatprep.subr.mxu0 0.0
    %276 = vmatpush1.msra.mxu0 0.0
    %277 = vmatprep.subr.mxu0 0.0
    %278 = vmatpush1.msra.mxu0 0.0
    %279 = vmatprep.subr.mxu0 0.0
    %280 = vmatpush1.msra.mxu0 0.0
    %281 = vmatprep.subr.mxu0 0.0
    %282 = vmatpush1.msra.mxu0 0.0
    %283 = vmatprep.subr.mxu0 0.0
    %284 = vmatpush1.msra.mxu0 0.0
    %285 = vmatprep.subr.mxu0 0.0
    %286 = vmatpush1.msra.mxu0 0.0
    %287 = vmatprep.subr.mxu0 0.0
    %288 = vmatpush1.msra.mxu0 0.0
    %289 = vmatprep.subr.mxu0 0.0
    %290 = vmatpush1.msra.mxu0 0.0
    %291 = vmatprep.subr.mxu0 0.0
    %292 = vmatpush1.msra.mxu0 0.0
    %293 = vmatprep.subr.mxu0 0.0
    %294 = vmatpush1.msra.mxu0 0.0
    %295 = vmatprep.subr.mxu0 0.0
    %296 = vmatpush1.msra.mxu0 0.0
    %297 = vmatprep.subr.mxu0 0.0
    %298 = vmatpush1.msra.mxu0 0.0
    %299 = vmatprep.subr.mxu0 0.0
    %300 = vmatpush1.msra.mxu0 0.0
    %301 = vmatprep.subr.mxu0 0.0
    %302 = vmatpush1.msra.mxu0 0.0
    %303 = vmatprep.subr.mxu0 0.0
    %304 = vmatpush1.msra.mxu0 0.0
    %305 = vmatprep.subr.mxu0 0.0
    %306 = vmatpush1.msra.mxu0 0.0
    %307 = vmatprep.subr.mxu0 0.0
    %308 = vmatpush1.msra.mxu0 0.0
    %309 = vmatprep.subr.mxu0 0.0
    %310 = vmatpush1.msra.mxu0 0.0
    %311 = vmatprep.subr.mxu0 0.0
    %312 = vmatpush1.msra.mxu0 0.0
    %313 = vmatprep.mubr.f32.mxu0 0.0
    %314 = vmatmul.mubr.f32.gmra.mrb[0].mxu0 %v247
    %v315 = vpop.f32.mrb[0].mxu0
    %v316 = vadd.f32 %v188, %v315
    %v317 = vpop.f32.mrb[0].mxu0
    %318 = vdwg.mxu0
    %v319 = vmax.f32 %v316, 0.0
    %v320 = vld [vmem:[%s3] sm:$0xff]
    %v321 = vld [vmem:[%s4] sm:$0x1]
    %v323 = vlaneseq
    %v324 = vshrl.u32 %v323, 7
    %v325 = vsub.s32 0, %v324
    %v326 = vrot.slane %v321, %v325
    %vm328 = vcmask 64512
    %v330 = vsel %vm328, %v319, 0
    %332 = vmatprep.subr.mxu0 0.0
    %333 = vmatpush1.msra.mxu0 %v320
    %334 = vmatprep.subr.mxu0 0.0
    %335 = vmatpush1.msra.mxu0 0.0
    %336 = vmatprep.subr.mxu0 0.0
    %337 = vmatpush1.msra.mxu0 0.0
    %338 = vmatprep.subr.mxu0 0.0
    %339 = vmatpush1.msra.mxu0 0.0
    %340 = vmatprep.subr.mxu0 0.0
    %341 = vmatpush1.msra.mxu0 0.0
    %342 = vmatprep.subr.mxu0 0.0
    %343 = vmatpush1.msra.mxu0 0.0
    %344 = vmatprep.subr.mxu0 0.0
    %345 = vmatpush1.msra.mxu0 0.0
    %346 = vmatprep.subr.mxu0 0.0
    %347 = vmatpush1.msra.mxu0 0.0
    %348 = vmatprep.subr.mxu0 0.0
    %349 = vmatpush1.msra.mxu0 0.0
    %350 = vmatprep.subr.mxu0 0.0
    %351 = vmatpush1.msra.mxu0 0.0
    %352 = vmatprep.subr.mxu0 0.0
    %353 = vmatpush1.msra.mxu0 0.0
    %354 = vmatprep.subr.mxu0 0.0
    %355 = vmatpush1.msra.mxu0 0.0
    %356 = vmatprep.subr.mxu0 0.0
    %357 = vmatpush1.msra.mxu0 0.0
    %358 = vmatprep.subr.mxu0 0.0
    %359 = vmatpush1.msra.mxu0 0.0
    %360 = vmatprep.subr.mxu0 0.0
    %361 = vmatpush1.msra.mxu0 0.0
    %362 = vmatprep.subr.mxu0 0.0
    %363 = vmatpush1.msra.mxu0 0.0
    %364 = vmatprep.subr.mxu0 0.0
    %365 = vmatpush1.msra.mxu0 0.0
    %366 = vmatprep.subr.mxu0 0.0
    %367 = vmatpush1.msra.mxu0 0.0
    %368 = vmatprep.subr.mxu0 0.0
    %369 = vmatpush1.msra.mxu0 0.0
    %370 = vmatprep.subr.mxu0 0.0
    %371 = vmatpush1.msra.mxu0 0.0
    %372 = vmatprep.subr.mxu0 0.0
    %373 = vmatpush1.msra.mxu0 0.0
    %374 = vmatprep.subr.mxu0 0.0
    %375 = vmatpush1.msra.mxu0 0.0
    %376 = vmatprep.subr.mxu0 0.0
    %377 = vmatpush1.msra.mxu0 0.0
    %378 = vmatprep.subr.mxu0 0.0
    %379 = vmatpush1.msra.mxu0 0.0
    %380 = vmatprep.subr.mxu0 0.0
    %381 = vmatpush1.msra.mxu0 0.0
    %382 = vmatprep.subr.mxu0 0.0
    %383 = vmatpush1.msra.mxu0 0.0
    %384 = vmatprep.subr.mxu0 0.0
    %385 = vmatpush1.msra.mxu0 0.0
    %386 = vmatprep.subr.mxu0 0.0
    %387 = vmatpush1.msra.mxu0 0.0
    %388 = vmatprep.subr.mxu0 0.0
    %389 = vmatpush1.msra.mxu0 0.0
    %390 = vmatprep.subr.mxu0 0.0
    %391 = vmatpush1.msra.mxu0 0.0
    %392 = vmatprep.subr.mxu0 0.0
    %393 = vmatpush1.msra.mxu0 0.0
    %394 = vmatprep.subr.mxu0 0.0
    %395 = vmatpush1.msra.mxu0 0.0
    %396 = vmatprep.mubr.f32.mxu0 0.0
    %397 = vmatmul.mubr.f32.gmra.mrb[0].mxu0 %v330
    %v398 = vpop.f32.mrb[0].mxu0
    %v399 = vadd.f32 %v326, %v398
    %v400 = vpop.f32.mrb[0].mxu0
    %401 = vdwg.mxu0
    %vm402 = vcmask 25600
    %403 = vst.msk [vmem:[#allocation5] sm:$0x3] %vm402, %v399
    // Predicated region
    $region26: #{tpu_custom_call.1} parent=1 // pred_check
      _
    $region27: #{tpu_custom_call.1} parent=1 // pred_check_branch
      %405 = sbr.rel (0) target = $region29
    $region28: #{tpu_custom_call.1} parent=1 // pred_region
      %s407 = ssub.s32 32, 32
      %408 = vsyncadd [#allocation4], %s407
      %s410 = sshll.u32 [#allocation5], 4
      %s411 = int_to_ptr.vmem [resolvable:$true] %s410
      %413 = dma.vmem_to_hbm [thread:$0]  %s411, 32, %s5, [#allocation4]
    $region29: #{tpu_custom_call.1} parent=1 // pred_fallthru
      _
    // Predicated region
    $region30: #{tpu_custom_call.1} parent=1 // pred_check
      _
    $region31: #{tpu_custom_call.1} parent=1 // pred_check_branch
      %415 = sbr.rel (0) target = $region33
    $region32: #{tpu_custom_call.1} parent=1 // pred_region
      %416 = dma.done [#allocation4], 32
    $region33: #{tpu_custom_call.1} parent=1 // pred_fallthru
      _
    %417 = vsyncpa [#allocation3], 1
    %418 = vsyncpa [#allocation4], 1

</llo_original>
